<compile_context>
chip_gen: v6e
topology: v6e:2x2x1
jax: 0.10.0
libtpu: 0.0.40
codegen_flags: <defaults>
</compile_context>

<pallas_src>
import jax
import jax.numpy as jnp
from jax.experimental import pallas as pl
from jax.experimental.pallas import tpu as pltpu


def _round_up(x: int, m: int) -> int:
    return ((x + m - 1) // m) * m


def _largest_tile(dim: int, unit: int, cap: int) -> int:
    """Largest multiple of `unit` that divides `dim` (itself a multiple of `unit`)
    and is <= cap."""
    cap = min(cap, dim)
    t = (cap // unit) * unit
    while t >= unit:
        if dim % t == 0:
            return t
        t -= unit
    return unit


# ---------------------------------------------------------------------------
# Kernels
# ---------------------------------------------------------------------------

def _linear_single_block_kernel(x_ref, w_ref, b_ref, o_ref):
    # Whole problem in one VMEM block: o = x @ W^T + b.
    acc = jnp.dot(x_ref[...], w_ref[...], preferred_element_type=jnp.float32)
    o_ref[...] = (acc + b_ref[...].astype(jnp.float32)).astype(o_ref.dtype)


def _linear_tiled_f32_kernel(x_ref, w_ref, b_ref, o_ref):
    # float32 output: accumulate directly into the resident output block
    # (its index_map ignores k). Bias is the k==0 initial value -> no scratch,
    # no epilogue copy.
    k = pl.program_id(2)

    @pl.when(k == 0)
    def _():
        o_ref[...] = jnp.broadcast_to(b_ref[...], o_ref.shape).astype(o_ref.dtype)

    o_ref[...] += jnp.dot(
        x_ref[...], w_ref[...], preferred_element_type=jnp.float32
    )


def _linear_tiled_acc_kernel(x_ref, w_ref, b_ref, o_ref, acc_ref):
    # Low-precision output: accumulate in an f32 scratch, cast once at k==last.
    k = pl.program_id(2)

    @pl.when(k == 0)
    def _():
        acc_ref[...] = jnp.zeros_like(acc_ref)

    acc_ref[...] += jnp.dot(
        x_ref[...], w_ref[...], preferred_element_type=jnp.float32
    )

    @pl.when(k == pl.num_programs(2) - 1)
    def _():
        o_ref[...] = (acc_ref[...] + b_ref[...].astype(jnp.float32)).astype(
            o_ref.dtype
        )


# ---------------------------------------------------------------------------
# Parameter preparation (done once) and the per-call apply.
# ---------------------------------------------------------------------------

def prepare_linear_params(weight, bias):
    """Pre-transpose and pre-pad the Linear parameters ONCE.

    weight: (out_features, in_features)  -- torch.nn.Linear.weight layout
    bias:   (out_features,)
    Returns a dict holding (K_pad, N_pad) weight and (1, N_pad) bias.
    """
    out_features, in_features = weight.shape
    assert bias.shape == (out_features,)
    k_pad = _round_up(in_features, 128)
    n_pad = _round_up(out_features, 128)
    w_p = jnp.pad(weight.T, ((0, k_pad - in_features), (0, n_pad - out_features)))
    b_p = jnp.pad(bias, (0, n_pad - out_features)).reshape(1, n_pad)
    return {
        "w": w_p,
        "b": b_p,
        "in_features": in_features,
        "out_features": out_features,
    }


_FAST_PATH_BYTES = 4 << 20  # whole problem below this -> single-block kernel


def linear_apply(x, params, *, tm_max=512, tn_max=1024, tk_max=1024,
                 force_tiled=False):
    """y = x @ W^T + b using the pre-prepared (transposed + padded) params."""
    B, in_features = x.shape
    assert in_features == params["in_features"]
    w_p, b_p = params["w"], params["b"]
    k_pad, n_pad = w_p.shape
    out_features = params["out_features"]
    out_dtype = x.dtype

    # Pad x along K only (x is the small, per-call operand).
    x_p = x
    if in_features != k_pad:
        x_p = jnp.pad(x, ((0, 0), (0, k_pad - in_features)))

    # ---- small-problem fast path: one block, no grid, no M padding ----------
    fast_bytes = (B * k_pad + k_pad * n_pad + n_pad + B * n_pad) * 4
    if fast_bytes <= _FAST_PATH_BYTES and not force_tiled:
        out = pl.pallas_call(
            _linear_single_block_kernel,
            out_shape=jax.ShapeDtypeStruct((B, n_pad), out_dtype),
        )(x_p, w_p, b_p)
        return out[:, :out_features]

    # ---- tiled path ----------------------------------------------------------
    m_pad = _round_up(B, 8)
    if m_pad != B:
        x_p = jnp.pad(x_p, ((0, m_pad - B), (0, 0)))

    # Single M tile for small batches -> W is streamed from HBM exactly once.
    if m_pad <= 1024:
        tm = m_pad
    else:
        tm = _largest_tile(m_pad, 8, tm_max)
    tk = _largest_tile(k_pad, 128, tk_max)
    tn = _largest_tile(n_pad, 128, tn_max)

    # Megacore: if only one (i, j) tile, split N so both TensorCores get work.
    if (m_pad // tm) * (n_pad // tn) < 2 and n_pad >= 256:
        tn = _largest_tile(n_pad, 128, n_pad // 2)

    grid = (m_pad // tm, n_pad // tn, k_pad // tk)

    if out_dtype == jnp.float32:
        kernel = _linear_tiled_f32_kernel
        scratch_shapes = []
        acc_bytes = 0
    else:
        kernel = _linear_tiled_acc_kernel
        scratch_shapes = [pltpu.VMEM((tm, tn), jnp.float32)]
        acc_bytes = tm * tn * 4

    # Double-buffered VMEM footprint (4B/elem upper bound) + margin.
    est = 2 * (tm * tk + tk * tn + tm * tn + tn) * 4 + acc_bytes
    vmem_limit = min(max(est + (4 << 20), 32 << 20), 56 << 20)

    out = pl.pallas_call(
        kernel,
        out_shape=jax.ShapeDtypeStruct((m_pad, n_pad), out_dtype),
        grid=grid,
        in_specs=[
            pl.BlockSpec((tm, tk), lambda i, j, k: (i, k)),   # x tile
            pl.BlockSpec((tk, tn), lambda i, j, k: (k, j)),   # W^T tile
            pl.BlockSpec((1, tn), lambda i, j, k: (0, j)),    # bias tile
        ],
        out_specs=pl.BlockSpec((tm, tn), lambda i, j, k: (i, j)),
        scratch_shapes=scratch_shapes,
        compiler_params=pltpu.CompilerParams(
            dimension_semantics=("parallel", "parallel", "arbitrary"),
            vmem_limit_bytes=vmem_limit,
        ),
    )(x_p, w_p, b_p)

    return out[:B, :out_features]


def linear_pallas(x, weight, bias, **kwargs):
    """One-shot convenience wrapper (prefer prepare_linear_params + linear_apply
    when the same parameters are reused across calls)."""
    return linear_apply(x, prepare_linear_params(weight, bias), **kwargs)


if __name__ == "__main__":
    # --- primary test: the LogisticModel forward at small shapes -------------
    B, in_features, out_features = 8, 32, 16

    key = jax.random.PRNGKey(0)
    kx, kw, kb, kx2, kw2, kb2 = jax.random.split(key, 6)

    x = jax.random.normal(kx, (B, in_features), dtype=jnp.float32)
    bound = 1.0 / (in_features ** 0.5)
    weight = jax.random.uniform(
        kw, (out_features, in_features), minval=-bound, maxval=bound,
        dtype=jnp.float32,
    )
    bias = jax.random.uniform(
        kb, (out_features,), minval=-bound, maxval=bound, dtype=jnp.float32
    )

    # Prepare (transpose + pad) the parameters ONCE; reuse across calls.
    params = prepare_linear_params(weight, bias)

    y = linear_apply(x, params)                 # single-block fast path
    y = jax.block_until_ready(y)
    y_ref = x @ weight.T + bias
    assert y.shape == y_ref.shape, "shape mismatch vs reference"
    assert jnp.allclose(y, y_ref, atol=1e-5, rtol=1e-5), "mismatch vs reference"

    # --- secondary test: exercise the tiled path on an awkward shape ---------
    B2, in2, out2 = 264, 192, 160               # non-128/8-aligned K/N, odd M
    x2 = jax.random.normal(kx2, (B2, in2), dtype=jnp.float32)
    bound2 = 1.0 / (in2 ** 0.5)
    w2 = jax.random.uniform(kw2, (out2, in2), minval=-bound2, maxval=bound2,
                            dtype=jnp.float32)
    b2 = jax.random.uniform(kb2, (out2,), minval=-bound2, maxval=bound2,
                            dtype=jnp.float32)
    params2 = prepare_linear_params(w2, b2)
    y2 = jax.block_until_ready(linear_apply(x2, params2, force_tiled=True))
    y2_ref = x2 @ w2.T + b2
    assert y2.shape == y2_ref.shape, "tiled-path shape mismatch vs reference"
    assert jnp.allclose(y2, y2_ref, atol=1e-4, rtol=1e-4), "tiled-path mismatch"

    # TODO(synk): the PyTorch forward applies no sigmoid, so none is fused here;
    # if a logistic activation is added upstream, fuse `jax.nn.sigmoid` into the
    # k==last epilogue (EUP slot, essentially free).
    print("KERNEL_OK")
</pallas_src>

<mosaic_0001>
module attributes {stable_mosaic.version = 11 : i64} {
  func.func @_linear_single_block_kernel(%arg0: memref<8x128xf32, #tpu.memory_space<vmem>>, %arg1: memref<128x128xf32, #tpu.memory_space<vmem>>, %arg2: memref<1x128xf32, #tpu.memory_space<vmem>>, %arg3: memref<8x128xf32, #tpu.memory_space<vmem>>) attributes {dimension_semantics = [], scalar_prefetch = 0 : i64, scratch_operands = 0 : i64, tpu.core_type = #tpu.core_type<tc>} {
    %c0 = arith.constant 0 : index
    %c0_0 = arith.constant 0 : index
    %0 = vector.load %arg0[%c0, %c0_0] : memref<8x128xf32, #tpu.memory_space<vmem>>, vector<8x128xf32>
    %c0_1 = arith.constant 0 : index
    %c0_2 = arith.constant 0 : index
    %1 = vector.load %arg1[%c0_1, %c0_2] : memref<128x128xf32, #tpu.memory_space<vmem>>, vector<128x128xf32>
    %cst = arith.constant dense<0.000000e+00> : vector<8x128xf32>
    %2 = tpu.matmul %0, %1, %cst {dimension_numbers = #tpu.dot_dimension_numbers<[1], [0], [0], [1], [0, 0, 1, 1], [], []>} : vector<8x128xf32>, vector<128x128xf32>, vector<8x128xf32> -> vector<8x128xf32>
    %c0_3 = arith.constant 0 : index
    %c0_4 = arith.constant 0 : index
    %3 = vector.load %arg2[%c0_3, %c0_4] : memref<1x128xf32, #tpu.memory_space<vmem>>, vector<1x128xf32>
    %4 = vector.broadcast %3 : vector<1x128xf32> to vector<8x128xf32>
    %5 = arith.addf %2, %4 : vector<8x128xf32>
    %c0_5 = arith.constant 0 : index
    %c0_6 = arith.constant 0 : index
    %6 = vector.load %arg3[%c0_5, %c0_6] : memref<8x128xf32, #tpu.memory_space<vmem>>, vector<8x128xf32>
    tpu.vector_store %arg3[%c0_5, %c0_6], %5 {strides = array<i32>} : memref<8x128xf32, #tpu.memory_space<vmem>>, vector<8x128xf32>,
    return
  }
}

</mosaic_0001>

<llo_original>
// kernel: tpu_custom_call.1
$region0: #{tpu_custom_call.1}
  #allocation0 [shape = 'u32[]', space=smem, size = 0x4, offset = 0x4, fixed_abs, tag = 'smem constant byte address 0x4 - core index']
  #allocation1 [shape = 'u32[144,128]{1,0:T(1,128)}', space=vmem, size = 0x12000, scoped, tag = 'internal scratch']
  %s0 = inlined_call_operand.hbm [shape: f32[8,128], index: 0, kind: input, shape index: {}]
  %s1 = inlined_call_operand.hbm [shape: f32[128,128], index: 1, kind: input, shape index: {}]
  %s2 = inlined_call_operand.vmem [shape: f32[1,128], index: 2, kind: input, shape index: {}]
  %s3 = inlined_call_operand.hbm [shape: f32[8,128], index: 3, kind: output, shape index: {}]
  %s4 = sld [smem:[#allocation0]]
  $region30: #{tpu_custom_call.1} parent=0
    _
  %s6 = ssub.s32 1, %s4
  %s7 = scalar_select 0, %s6, %s4
  $region1: #{tpu_custom_call.1} parent=0
    #allocation2 [shape = 'u8[4096]{0}', space=vmem, size = 0x1000, scoped, tag = 'input window, operand 0, single buffered']
    #allocation3 [shape = 's32[1]{0}', space=sflag, size = 0x4, scoped, tag = 'scoped memory for tpu_custom_call.1']
    #allocation4 [shape = 's32[1]{0}', space=sflag, size = 0x4, scoped, tag = 'scoped memory for tpu_custom_call.1']
    #allocation5 [shape = 'u8[65536]{0}', space=vmem, size = 0x10000, scoped, tag = 'input window, operand 1, single buffered']
    #allocation6 [shape = 's32[1]{0}', space=sflag, size = 0x4, scoped, tag = 'scoped memory for tpu_custom_call.1']
    #allocation7 [shape = 'u8[4096]{0}', space=vmem, size = 0x1000, scoped, tag = 'output window, operand 0, single buffered']
    %8 = vsyncpa [#allocation3], 0
    %9 = vsyncpa [#allocation6], 0
    %10 = vsyncpa [#allocation4], 0
    // Predicated region
    $region2: #{tpu_custom_call.1} parent=1 // pred_check
      _
    $region3: #{tpu_custom_call.1} parent=1 // pred_check_branch
      %12 = sbr.rel (0) target = $region5
    $region4: #{tpu_custom_call.1} parent=1 // pred_region
      %s14 = ssub.s32 128, 128
      %15 = vsyncadd [#allocation3], %s14
      %s17 = sshll.u32 [#allocation2], 4
      %s18 = int_to_ptr.vmem [resolvable:$true] %s17
      %20 = dma.hbm_to_vmem [thread:$0]  %s0, 128, %s18, [#allocation3]
    $region5: #{tpu_custom_call.1} parent=1 // pred_fallthru
      _
    // Predicated region
    $region6: #{tpu_custom_call.1} parent=1 // pred_check
      _
    $region7: #{tpu_custom_call.1} parent=1 // pred_check_branch
      %22 = sbr.rel (0) target = $region9
    $region8: #{tpu_custom_call.1} parent=1 // pred_region
      %s24 = ssub.s32 2048, 2048
      %25 = vsyncadd [#allocation6], %s24
      %s26 = sshll.u32 [#allocation5], 4
      %s27 = int_to_ptr.vmem [resolvable:$true] %s26
      %32 = dma.hbm_to_vmem [thread:$0]  %s1, 2048, %s27, [#allocation6], 128, 128, 8
    $region9: #{tpu_custom_call.1} parent=1 // pred_fallthru
      _
    // Predicated region
    $region10: #{tpu_custom_call.1} parent=1 // pred_check
      _
    $region11: #{tpu_custom_call.1} parent=1 // pred_check_branch
      %34 = sbr.rel (0) target = $region13
    $region12: #{tpu_custom_call.1} parent=1 // pred_region
      _
    $region13: #{tpu_custom_call.1} parent=1 // pred_fallthru
      _
    // Predicated region
    $region14: #{tpu_custom_call.1} parent=1 // pred_check
      _
    $region15: #{tpu_custom_call.1} parent=1 // pred_check_branch
      %36 = sbr.rel (0) target = $region17
    $region16: #{tpu_custom_call.1} parent=1 // pred_region
      %37 = dma.done [#allocation3], 128
    $region17: #{tpu_custom_call.1} parent=1 // pred_fallthru
      _
    // Predicated region
    $region18: #{tpu_custom_call.1} parent=1 // pred_check
      _
    $region19: #{tpu_custom_call.1} parent=1 // pred_check_branch
      %39 = sbr.rel (0) target = $region21
    $region20: #{tpu_custom_call.1} parent=1 // pred_region
      %40 = dma.done [#allocation6], 2048
    $region21: #{tpu_custom_call.1} parent=1 // pred_fallthru
      _
    %v41 = vld [vmem:[#allocation2] sm:$0xff]
    %v42 = vld [vmem:[#allocation5] sm:$0xff]
    %v43 = vld [vmem:[#allocation5 + $0x8] sm:$0xff]
    %v44 = vld [vmem:[#allocation5 + $0x10] sm:$0xff]
    %v45 = vld [vmem:[#allocation5 + $0x18] sm:$0xff]
    %v46 = vld [vmem:[#allocation5 + $0x20] sm:$0xff]
    %v47 = vld [vmem:[#allocation5 + $0x28] sm:$0xff]
    %v48 = vld [vmem:[#allocation5 + $0x30] sm:$0xff]
    %v49 = vld [vmem:[#allocation5 + $0x38] sm:$0xff]
    %v50 = vld [vmem:[#allocation5 + $0x40] sm:$0xff]
    %v51 = vld [vmem:[#allocation5 + $0x48] sm:$0xff]
    %v52 = vld [vmem:[#allocation5 + $0x50] sm:$0xff]
    %v53 = vld [vmem:[#allocation5 + $0x58] sm:$0xff]
    %v54 = vld [vmem:[#allocation5 + $0x60] sm:$0xff]
    %v55 = vld [vmem:[#allocation5 + $0x68] sm:$0xff]
    %v56 = vld [vmem:[#allocation5 + $0x70] sm:$0xff]
    %v57 = vld [vmem:[#allocation5 + $0x78] sm:$0xff]
    %v58 = vld [vmem:[%s2] sm:$0x1]
    %v60 = vlaneseq
    %v61 = vshrl.u32 %v60, 7
    %v62 = vsub.s32 0, %v61
    %v63 = vrot.slane %v58, %v62
    %65 = vmatprep.subr.mxu0 0.0
    %66 = vmatpush1.msra.mxu0 %v57
    %67 = vmatprep.subr.mxu0 0.0
    %68 = vmatpush1.msra.mxu0 %v56
    %69 = vmatprep.subr.mxu0 0.0
    %70 = vmatpush1.msra.mxu0 %v55
    %71 = vmatprep.subr.mxu0 0.0
    %72 = vmatpush1.msra.mxu0 %v54
    %73 = vmatprep.subr.mxu0 0.0
    %74 = vmatpush1.msra.mxu0 %v53
    %75 = vmatprep.subr.mxu0 0.0
    %76 = vmatpush1.msra.mxu0 %v52
    %77 = vmatprep.subr.mxu0 0.0
    %78 = vmatpush1.msra.mxu0 %v51
    %79 = vmatprep.subr.mxu0 0.0
    %80 = vmatpush1.msra.mxu0 %v50
    %81 = vmatprep.subr.mxu0 0.0
    %82 = vmatpush1.msra.mxu0 %v49
    %83 = vmatprep.subr.mxu0 0.0
    %84 = vmatpush1.msra.mxu0 %v48
    %85 = vmatprep.subr.mxu0 0.0
    %86 = vmatpush1.msra.mxu0 %v47
    %87 = vmatprep.subr.mxu0 0.0
    %88 = vmatpush1.msra.mxu0 %v46
    %89 = vmatprep.subr.mxu0 0.0
    %90 = vmatpush1.msra.mxu0 %v45
    %91 = vmatprep.subr.mxu0 0.0
    %92 = vmatpush1.msra.mxu0 %v44
    %93 = vmatprep.subr.mxu0 0.0
    %94 = vmatpush1.msra.mxu0 %v43
    %95 = vmatprep.subr.mxu0 0.0
    %96 = vmatpush1.msra.mxu0 %v42
    %97 = vmatprep.subr.mxu0 0.0
    %98 = vmatpush2.msra.mxu0 0.0
    %99 = vmatprep.subr.mxu0 0.0
    %100 = vmatpush2.msra.mxu0 0.0
    %101 = vmatprep.subr.mxu0 0.0
    %102 = vmatpush2.msra.mxu0 0.0
    %103 = vmatprep.subr.mxu0 0.0
    %104 = vmatpush2.msra.mxu0 0.0
    %105 = vmatprep.subr.mxu0 0.0
    %106 = vmatpush2.msra.mxu0 0.0
    %107 = vmatprep.subr.mxu0 0.0
    %108 = vmatpush2.msra.mxu0 0.0
    %109 = vmatprep.subr.mxu0 0.0
    %110 = vmatpush2.msra.mxu0 0.0
    %111 = vmatprep.subr.mxu0 0.0
    %112 = vmatpush2.msra.mxu0 0.0
    %113 = vmatprep.subr.mxu0 0.0
    %114 = vmatpush2.msra.mxu0 0.0
    %115 = vmatprep.subr.mxu0 0.0
    %116 = vmatpush2.msra.mxu0 0.0
    %117 = vmatprep.subr.mxu0 0.0
    %118 = vmatpush2.msra.mxu0 0.0
    %119 = vmatprep.subr.mxu0 0.0
    %120 = vmatpush2.msra.mxu0 0.0
    %121 = vmatprep.subr.mxu0 0.0
    %122 = vmatpush2.msra.mxu0 0.0
    %123 = vmatprep.subr.mxu0 0.0
    %124 = vmatpush2.msra.mxu0 0.0
    %125 = vmatprep.subr.mxu0 0.0
    %126 = vmatpush2.msra.mxu0 0.0
    %127 = vmatprep.subr.mxu0 0.0
    %128 = vmatpush2.msra.mxu0 0.0
    %129 = vmatprep.mubr.f32.mxu0 0.0
    %130 = vmatmul.mubr.f32.gmra.mxu0 %v41
    %v131 = vpop.f32.mrf.mxu0
    %v132 = vadd.f32 %v63, %v131
    %v133 = vpop.f32.mrf.mxu0
    %134 = vdwg.mxu0
    %135 = vst [vmem:[#allocation7] sm:$0xff] %v132
    // Predicated region
    $region22: #{tpu_custom_call.1} parent=1 // pred_check
      _
    $region23: #{tpu_custom_call.1} parent=1 // pred_check_branch
      %137 = sbr.rel (0) target = $region25
    $region24: #{tpu_custom_call.1} parent=1 // pred_region
      %s139 = ssub.s32 128, 128
      %140 = vsyncadd [#allocation4], %s139
      %s142 = sshll.u32 [#allocation7], 4
      %s143 = int_to_ptr.vmem [resolvable:$true] %s142
      %145 = dma.vmem_to_hbm [thread:$0]  %s143, 128, %s3, [#allocation4]
    $region25: #{tpu_custom_call.1} parent=1 // pred_fallthru
      _
    // Predicated region
    $region26: #{tpu_custom_call.1} parent=1 // pred_check
      _
    $region27: #{tpu_custom_call.1} parent=1 // pred_check_branch
      %147 = sbr.rel (0) target = $region29
    $region28: #{tpu_custom_call.1} parent=1 // pred_region
      %148 = dma.done [#allocation4], 128
    $region29: #{tpu_custom_call.1} parent=1 // pred_fallthru
      _
    %149 = vsyncpa [#allocation3], 1
    %150 = vsyncpa [#allocation6], 1
    %151 = vsyncpa [#allocation4], 1

</llo_original>
